<compile_context>
chip_gen: v7x
topology: tpu7x:2x2x1
jax: 0.10.0
libtpu: 0.0.40
codegen_flags: <defaults>
</compile_context>

<pallas_src>
import functools

import jax
import jax.numpy as jnp
from jax.experimental import pallas as pl
from jax.experimental.pallas import tpu as pltpu


def mstc_kernel(x_ref, w_ref, b_ref, out_ref, *, taps, dilation, pad, t_len):
    # x_ref:   (1, C_in, T + pad)          left-zero-padded input, one batch elem
    # w_ref:   (C_out_total, taps * C_in)  fused causal weight (all 3 branches)
    # b_ref:   (C_out_total, 1)            fused bias
    # out_ref: (1, C_out_total, T)
    #
    # Stack the `taps` time-shifted views along the contraction axis so the
    # three dilated convs collapse into a single MXU matmul (K = taps * C_in).
    shifted = []
    for s in range(taps):
        start = pad - s * dilation                      # static offset
        shifted.append(x_ref[0, :, start:start + t_len])  # (C_in, T)
    x_stack = jnp.concatenate(shifted, axis=0)          # (taps*C_in, T)

    y = jnp.dot(w_ref[...], x_stack,
                preferred_element_type=jnp.float32)     # (C_out_total, T), f32 acc
    y = y + b_ref[...].astype(jnp.float32)              # bias broadcast over lanes
    y = jnp.maximum(y, 0.0)                             # ReLU (VPU)
    out_ref[0] = y.astype(out_ref.dtype)                # lane-dense store (T=128)


def mstc_forward(x, weights, biases, kernel_list, dilation):
    """x: (B, C_in, T); weights[i]: (C_out_i, C_in, k_i); biases[i]: (C_out_i,)."""
    B, C_in, T = x.shape
    k_max = max(kernel_list)
    pad = (k_max - 1) * dilation
    c_out_total = sum(int(w.shape[0]) for w in weights)

    # ---- one-time wrapper-side weight fusion -------------------------------
    # y[:, t] = sum_s W_s @ x[:, t - s*dilation]   with  W_s = w_i[:, :, k_i-1-s]
    # (zero for branches whose kernel is shorter than s+1). Column block s of
    # w_flat is [W_s(branch0); W_s(branch1); W_s(branch2)] so channel order
    # matches torch.cat([y0, y1, y2], dim=1).
    blocks = []
    for s in range(k_max):
        cols = []
        for w in weights:
            k_i = int(w.shape[-1])
            if s < k_i:
                cols.append(w[:, :, k_i - 1 - s])
            else:
                cols.append(jnp.zeros((w.shape[0], C_in), w.dtype))
        blocks.append(jnp.concatenate(cols, axis=0))        # (C_out_total, C_in)
    w_flat = jnp.concatenate(blocks, axis=1)                 # (C_out_total, k_max*C_in)
    b_cat = jnp.concatenate(biases, axis=0)[:, None]         # (C_out_total, 1)

    # Causal left pad; PyTorch pads both sides then clip_end drops the right
    # pad, which is equivalent to left-pad-only.
    x_pad = jnp.pad(x, ((0, 0), (0, 0), (pad, 0)))
    Tp = T + pad

    kernel = functools.partial(mstc_kernel, taps=k_max, dilation=dilation,
                               pad=pad, t_len=T)
    out = pl.pallas_call(
        kernel,
        out_shape=jax.ShapeDtypeStruct((B, c_out_total, T), x.dtype),
        grid=(B,),
        in_specs=[
            pl.BlockSpec((1, C_in, Tp), lambda b: (b, 0, 0)),
            pl.BlockSpec((c_out_total, k_max * C_in), lambda b: (0, 0)),
            pl.BlockSpec((c_out_total, 1), lambda b: (0, 0)),
        ],
        out_specs=pl.BlockSpec((1, c_out_total, T), lambda b: (b, 0, 0)),
        compiler_params=pltpu.CompilerParams(
            dimension_semantics=("parallel",)),
    )(x_pad, w_flat, b_cat)
    return out


def ref_mstc(x, weights, biases, kernel_list, dilation):
    """Plain-JAX reference with the exact PyTorch MSTC semantics."""
    B, C, T = x.shape
    outs = []
    for w, b, k in zip(weights, biases, kernel_list):
        p = (k - 1) * dilation
        xp = jnp.pad(x, ((0, 0), (0, 0), (p, 0)))
        y = jnp.zeros((B, w.shape[0], T), jnp.float32)
        for j in range(k):
            y = y + jnp.einsum(
                "oc,bct->bot",
                w[:, :, j].astype(jnp.float32),
                xp[:, :, j * dilation:j * dilation + T].astype(jnp.float32))
        y = y + b.astype(jnp.float32)[None, :, None]
        outs.append(y)
    return jnp.maximum(jnp.concatenate(outs, axis=1), 0.0)


if __name__ == "__main__":
    # cfg: itcn_d=24, kernel_list=(2,3,5), dilation=2; batch=2, seq T=128.
    B, C, T = 2, 24, 128
    kernel_list = (2, 3, 5)
    dilation = 2
    c_out = C // 3

    key = jax.random.PRNGKey(0)
    kx, k0w, k0b, k1w, k1b, k2w, k2b = jax.random.split(key, 7)
    x = jax.random.normal(kx, (B, C, T), dtype=jnp.float32)

    weights, biases = [], []
    for kw, kb, k in ((k0w, k0b, kernel_list[0]),
                      (k1w, k1b, kernel_list[1]),
                      (k2w, k2b, kernel_list[2])):
        bound = float(1.0 / (C * k) ** 0.5)   # nn.Conv1d default init range
        weights.append(jax.random.uniform(kw, (c_out, C, k), jnp.float32,
                                          -bound, bound))
        biases.append(jax.random.uniform(kb, (c_out,), jnp.float32,
                                         -bound, bound))

    out = mstc_forward(x, weights, biases, kernel_list, dilation)
    jax.block_until_ready(out)

    ref = ref_mstc(x, weights, biases, kernel_list, dilation)
    assert out.shape == (B, 3 * c_out, T)
    assert jnp.allclose(out, ref, atol=1e-4, rtol=1e-4), \
        float(jnp.max(jnp.abs(out - ref)))

    print("KERNEL_OK")
</pallas_src>

<mosaic_0001>
module attributes {stable_mosaic.version = 11 : i64} {
  func.func @mstc_kernel(%arg0: i32, %arg1: memref<1x24x136xf32, #tpu.memory_space<vmem>>, %arg2: memref<24x120xf32, #tpu.memory_space<vmem>>, %arg3: memref<24x1xf32, #tpu.memory_space<vmem>>, %arg4: memref<1x24x128xf32, #tpu.memory_space<vmem>>) attributes {dimension_semantics = [#tpu.dimension_semantics<parallel>], iteration_bounds = array<i64: 2>, scalar_prefetch = 0 : i64, scratch_operands = 0 : i64, tpu.core_type = #tpu.core_type<tc>, window_params = [{transform_indices = @transform_0, window_bounds = array<i64: 1, 24, 136>}, {pipeline_mode = #tpu.pipeline_mode<synchronous>, transform_indices = @transform_1, window_bounds = array<i64: 24, 120>}, {pipeline_mode = #tpu.pipeline_mode<synchronous>, transform_indices = @transform_2, window_bounds = array<i64: 24, 1>}, {transform_indices = @transform_3, window_bounds = array<i64: 1, 24, 128>}]} {
    %c0 = arith.constant 0 : index
    %c0_0 = arith.constant 0 : index
    %c8 = arith.constant 8 : index
    %0 = vector.load %arg1[%c0, %c0_0, %c8] : memref<1x24x136xf32, #tpu.memory_space<vmem>>, vector<1x24x128xf32>
    %1 = vector.shape_cast %0 : vector<1x24x128xf32> to vector<24x128xf32>
    %c0_1 = arith.constant 0 : index
    %c0_2 = arith.constant 0 : index
    %c6 = arith.constant 6 : index
    %2 = vector.load %arg1[%c0_1, %c0_2, %c6] : memref<1x24x136xf32, #tpu.memory_space<vmem>>, vector<1x24x128xf32>
    %3 = vector.shape_cast %2 : vector<1x24x128xf32> to vector<24x128xf32>
    %c0_3 = arith.constant 0 : index
    %c0_4 = arith.constant 0 : index
    %c4 = arith.constant 4 : index
    %4 = vector.load %arg1[%c0_3, %c0_4, %c4] : memref<1x24x136xf32, #tpu.memory_space<vmem>>, vector<1x24x128xf32>
    %5 = vector.shape_cast %4 : vector<1x24x128xf32> to vector<24x128xf32>
    %c0_5 = arith.constant 0 : index
    %c0_6 = arith.constant 0 : index
    %c2 = arith.constant 2 : index
    %6 = vector.load %arg1[%c0_5, %c0_6, %c2] : memref<1x24x136xf32, #tpu.memory_space<vmem>>, vector<1x24x128xf32>
    %7 = vector.shape_cast %6 : vector<1x24x128xf32> to vector<24x128xf32>
    %c0_7 = arith.constant 0 : index
    %c0_8 = arith.constant 0 : index
    %c0_9 = arith.constant 0 : index
    %8 = vector.load %arg1[%c0_7, %c0_8, %c0_9] : memref<1x24x136xf32, #tpu.memory_space<vmem>>, vector<1x24x128xf32>
    %9 = vector.shape_cast %8 : vector<1x24x128xf32> to vector<24x128xf32>
    %10 = tpu.concatenate %1, %3, %5, %7, %9 in 0 : vector<24x128xf32>, vector<24x128xf32>, vector<24x128xf32>, vector<24x128xf32>, vector<24x128xf32> -> vector<120x128xf32>
    %c0_10 = arith.constant 0 : index
    %c0_11 = arith.constant 0 : index
    %11 = vector.load %arg2[%c0_10, %c0_11] : memref<24x120xf32, #tpu.memory_space<vmem>>, vector<24x120xf32>
    %cst = arith.constant dense<0.000000e+00> : vector<24x128xf32>
    %12 = tpu.matmul %11, %10, %cst {dimension_numbers = #tpu.dot_dimension_numbers<[1], [0], [0], [1], [0, 0, 1, 1], [], []>} : vector<24x120xf32>, vector<120x128xf32>, vector<24x128xf32> -> vector<24x128xf32>
    %c0_12 = arith.constant 0 : index
    %c0_13 = arith.constant 0 : index
    %13 = vector.load %arg3[%c0_12, %c0_13] : memref<24x1xf32, #tpu.memory_space<vmem>>, vector<24x1xf32>
    %14 = vector.broadcast %13 : vector<24x1xf32> to vector<24x128xf32>
    %15 = arith.addf %12, %14 : vector<24x128xf32>
    %cst_14 = arith.constant 0.000000e+00 : f32
    %16 = vector.broadcast %cst_14 : f32 to vector<24x128xf32>
    %17 = arith.maximumf %15, %16 : vector<24x128xf32>
    %c0_15 = arith.constant 0 : index
    %c0_16 = arith.constant 0 : index
    %c0_17 = arith.constant 0 : index
    %18 = vector.load %arg4[%c0_15, %c0_16, %c0_17] : memref<1x24x128xf32, #tpu.memory_space<vmem>>, vector<1x24x128xf32>
    %19 = vector.shape_cast %18 : vector<1x24x128xf32> to vector<24x128xf32>
    %20 = vector.shape_cast %17 : vector<24x128xf32> to vector<1x24x128xf32>
    tpu.vector_store %arg4[%c0_15, %c0_16, %c0_17], %20 {strides = array<i32>} : memref<1x24x128xf32, #tpu.memory_space<vmem>>, vector<1x24x128xf32>,
    return
  }
  func.func @transform_0(%arg0: i32) -> (i32, i32, i32) {
    %c0_i32 = arith.constant 0 : i32
    %c0_i32_0 = arith.constant 0 : i32
    %c0_i32_1 = arith.constant 0 : i32
    return %arg0, %c0_i32, %c0_i32_0 : i32, i32, i32
  }
  func.func @transform_1(%arg0: i32) -> (i32, i32) {
    %c0_i32 = arith.constant 0 : i32
    %c0_i32_0 = arith.constant 0 : i32
    %c0_i32_1 = arith.constant 0 : i32
    return %c0_i32, %c0_i32_0 : i32, i32
  }
  func.func @transform_2(%arg0: i32) -> (i32, i32) {
    %c0_i32 = arith.constant 0 : i32
    %c0_i32_0 = arith.constant 0 : i32
    %c0_i32_1 = arith.constant 0 : i32
    return %c0_i32, %c0_i32_0 : i32, i32
  }
  func.func @transform_3(%arg0: i32) -> (i32, i32, i32) {
    %c0_i32 = arith.constant 0 : i32
    %c0_i32_0 = arith.constant 0 : i32
    %c0_i32_1 = arith.constant 0 : i32
    return %arg0, %c0_i32, %c0_i32_0 : i32, i32, i32
  }
}

</mosaic_0001>

<llo_original>
// kernel: tpu_custom_call.1
$region0: #{tpu_custom_call.1}
  #allocation0 [shape = 'u32[]', space=smem, size = 0x4, offset = 0x4, fixed_abs, tag = 'smem constant byte address 0x4 - core index']
  #allocation1 [shape = 'u32[144,128]{1,0:T(1,128)}', space=vmem, size = 0x12000, scoped, tag = 'internal scratch']
  %s0 = inlined_call_operand.hbm [shape: f32[2,24,136], index: 0, kind: input, shape index: {}]
  %s1 = inlined_call_operand.vmem [shape: f32[24,120], index: 1, kind: input, shape index: {}]
  %s2 = inlined_call_operand.vmem [shape: f32[24,1], index: 2, kind: input, shape index: {}]
  %s3 = inlined_call_operand.hbm [shape: f32[2,24,128], index: 3, kind: output, shape index: {}]
  %s4 = sld [smem:[#allocation0]]
  $region49: #{tpu_custom_call.1} parent=0
    _
  %s6 = ssub.s32 1, %s4
  %s7 = scalar_select 0, %s6, %s4
  $region1: #{tpu_custom_call.1} parent=0
    #allocation2 [shape = 'u8[49152]{0}', space=vmem, size = 0xc000, scoped, tag = 'input window, operand 0']
    #allocation3 [shape = 's32[2]{0}', space=sflag, size = 0x8, scoped, tag = 'scoped memory for tpu_custom_call.1']
    #allocation4 [shape = 's32[2]{0}', space=sflag, size = 0x8, scoped, tag = 'scoped memory for tpu_custom_call.1']
    #allocation5 [shape = 'u8[24576]{0}', space=vmem, size = 0x6000, scoped, tag = 'output window, operand 0']
    %8 = vsyncpa [#allocation3], 0
    %s9 = scalar_lea.sflag [#allocation3], 1
    %10 = vsyncpa %s9, 0
    %11 = vsyncpa [#allocation4], 0
    %s12 = scalar_lea.sflag [#allocation4], 1
    %13 = vsyncpa %s12, 0
    loop: start=0, step=1, limit=4
    $region2: #{tpu_custom_call.1} parent=1 // loop_pre_header
      _
    $region3: #{tpu_custom_call.1} parent=1 // loop_header
      %s15 = sphi 0, %s19
      %p16 = scmp.ge.s32.totalorder %s15, 4
      %s25 = sphi 0, %s27
      %s28 = sphi 0, %s25
      %s29 = sphi 0, %s28
      %s45 = sphi 0, %s29
      %s49 = sphi 0, %s49
      %s51 = sphi 0, %s49
      %s52 = sphi 0, %s51
      %s66 = sphi 0, %s52
      %s70 = sphi 0, %s70
      %s72 = sphi 0, %s70
      %s73 = sphi 0, %s72
      %s87 = sphi 0, %s73
      %s93 = sphi 0, %s95
      %s96 = sphi 0, %s93
      %s97 = sphi 0, %s96
      %s113 = sphi 0, %s97
    $region4: #{tpu_custom_call.1} parent=1 // loop_header_branch
      %18 = sbr.rel (%p16) target = $region8
    $region5: #{tpu_custom_call.1} parent=1 // loop_body
      %s20 = ssub.s32 %s15, 1
      %s21 = ssub.s32 %s15, 2
      %s22 = sadd.s32 %s15, 1
      %s23 = ssub.s32 %s15, %s22
      %p24 = scmp.eq.s32.totalorder %s23, 0
      %s26 = sadd.s32 %s25, 1
      %s27 = scalar_select %p24, %s25, %s26
      %p30 = pneg %p24
      %p31 = scmp.eq.s32.totalorder %s15, 1
      %p32 = por %p30, %p31
      %p33 = scmp.ne.s32.totalorder %s25, %s28
      %p34 = scmp.eq.s32.totalorder %s15, 0
      %p35 = por %p33, %p34
      %p36 = scmp.ne.s32.totalorder %s25, %s28
      %p37 = scmp.eq.s32.totalorder %s20, 1
      %p38 = por %p36, %p37
      %p39 = scmp.ne.s32.totalorder %s28, %s29
      %p40 = scmp.eq.s32.totalorder %s20, 0
      %p41 = por %p39, %p40
      %p42 = scmp.ne.s32.totalorder %s28, %s29
      %p43 = scmp.eq.s32.totalorder %s21, 1
      %p44 = por %p42, %p43
      %p46 = scmp.ne.s32.totalorder %s29, %s45
      %p47 = scmp.eq.s32.totalorder %s21, 0
      %p48 = por %p46, %p47
      %s50 = sadd.s32 %s49, 1
      %p53 = scmp.eq.s32.totalorder %s15, 1
      %p54 = scmp.ne.s32.totalorder %s49, %s51
      %p55 = scmp.eq.s32.totalorder %s15, 0
      %p56 = por %p54, %p55
      %p57 = scmp.ne.s32.totalorder %s49, %s51
      %p58 = scmp.eq.s32.totalorder %s20, 1
      %p59 = por %p57, %p58
      %p60 = scmp.ne.s32.totalorder %s51, %s52
      %p61 = scmp.eq.s32.totalorder %s20, 0
      %p62 = por %p60, %p61
      %p63 = scmp.ne.s32.totalorder %s51, %s52
      %p64 = scmp.eq.s32.totalorder %s21, 1
      %p65 = por %p63, %p64
      %p67 = scmp.ne.s32.totalorder %s52, %s66
      %p68 = scmp.eq.s32.totalorder %s21, 0
      %p69 = por %p67, %p68
      %s71 = sadd.s32 %s70, 1
      %p74 = scmp.eq.s32.totalorder %s15, 1
      %p75 = scmp.ne.s32.totalorder %s70, %s72
      %p76 = scmp.eq.s32.totalorder %s15, 0
      %p77 = por %p75, %p76
      %p78 = scmp.ne.s32.totalorder %s70, %s72
      %p79 = scmp.eq.s32.totalorder %s20, 1
      %p80 = por %p78, %p79
      %p81 = scmp.ne.s32.totalorder %s72, %s73
      %p82 = scmp.eq.s32.totalorder %s20, 0
      %p83 = por %p81, %p82
      %p84 = scmp.ne.s32.totalorder %s72, %s73
      %p85 = scmp.eq.s32.totalorder %s21, 1
      %p86 = por %p84, %p85
      %p88 = scmp.ne.s32.totalorder %s73, %s87
      %p89 = scmp.eq.s32.totalorder %s21, 0
      %p90 = por %p88, %p89
      %s91 = ssub.s32 %s15, %s22
      %p92 = scmp.eq.s32.totalorder %s91, 0
      %s94 = sadd.s32 %s93, 1
      %s95 = scalar_select %p92, %s93, %s94
      %p98 = pneg %p92
      %p99 = scmp.eq.s32.totalorder %s15, 1
      %p100 = por %p98, %p99
      %p101 = scmp.ne.s32.totalorder %s93, %s96
      %p102 = scmp.eq.s32.totalorder %s15, 0
      %p103 = por %p101, %p102
      %p104 = scmp.ne.s32.totalorder %s93, %s96
      %p105 = scmp.eq.s32.totalorder %s20, 1
      %p106 = por %p104, %p105
      %p107 = scmp.ne.s32.totalorder %s96, %s97
      %p108 = scmp.eq.s32.totalorder %s20, 0
      %p109 = por %p107, %p108
      %p110 = scmp.ne.s32.totalorder %s96, %s97
      %p111 = scmp.eq.s32.totalorder %s21, 1
      %p112 = por %p110, %p111
      %p114 = scmp.ne.s32.totalorder %s97, %s113
      %p115 = scmp.eq.s32.totalorder %s21, 0
      %p116 = por %p114, %p115
      %p117 = scmp.le.s32.totalorder 1, %s15
      %p118 = scmp.lt.s32.totalorder %s15, 3
      %p119 = pnand %p117, %p118
      %p120 = pneg %p119
      // Predicated region
      $region9: #{tpu_custom_call.1} parent=5 // pred_check
        _
      $region10: #{tpu_custom_call.1} parent=5 // pred_check_branch
        %122 = sbr.rel (%p119) target = $region12
      $region11: #{tpu_custom_call.1} parent=5 // pred_region
        %s123 = ssub.s32 %s15, 1
        // Predicated region
        $region13: #{tpu_custom_call.1} parent=11 // pred_check
          %p124 = pneg %p62
        $region14: #{tpu_custom_call.1} parent=11 // pred_check_branch
          %126 = sbr.rel (%p124) target = $region16
        $region15: #{tpu_custom_call.1} parent=11 // pred_region
          _
        $region16: #{tpu_custom_call.1} parent=11 // pred_fallthru
          _
        // Predicated region
        $region17: #{tpu_custom_call.1} parent=11 // pred_check
          %p127 = pneg %p83
        $region18: #{tpu_custom_call.1} parent=11 // pred_check_branch
          %129 = sbr.rel (%p127) target = $region20
        $region19: #{tpu_custom_call.1} parent=11 // pred_region
          _
        $region20: #{tpu_custom_call.1} parent=11 // pred_fallthru
          _
      $region12: #{tpu_custom_call.1} parent=5 // pred_fallthru
        _
      %p130 = scmp.lt.s32.totalorder %s15, 2
      // Predicated region
      $region21: #{tpu_custom_call.1} parent=5 // pred_check
        %p131 = pneg %p130
      $region22: #{tpu_custom_call.1} parent=5 // pred_check_branch
        %133 = sbr.rel (%p131) target = $region24
      $region23: #{tpu_custom_call.1} parent=5 // pred_region
        // Predicated region
        $region25: #{tpu_custom_call.1} parent=23 // pred_check
          %p134 = pneg %p35
        $region26: #{tpu_custom_call.1} parent=23 // pred_check_branch
          %136 = sbr.rel (%p134) target = $region28
        $region27: #{tpu_custom_call.1} parent=23 // pred_region
          %s137 = sand.u32 %s25, 1
          %s138 = scalar_lea.sflag [#allocation3], %s137
          %s139 = sand.u32 %s25, 1
          %s140 = smul.addr %s139, 48
          %s141 = scalar_lea.vmem [#allocation2], %s140
          %s143 = ssub.s32 768, 768
          %144 = vsyncadd %s138, %s143
          %s145 = smul.addr %s15, 6
          %s146 = smul.addr %s145, 128
          %s147 = scalar_lea.hbm %s0, %s146
          %s148 = sshll.u32 %s141, 4
          %s149 = int_to_ptr.vmem [resolvable:$true] %s148
          %154 = dma.hbm_to_vmem [thread:$0]  %s147, 768, %s149, %s138, 256, 256, 16
        $region28: #{tpu_custom_call.1} parent=23 // pred_fallthru
          _
      $region24: #{tpu_custom_call.1} parent=5 // pred_fallthru
        _
      %p155 = scmp.le.s32.totalorder 1, %s15
      %p156 = scmp.lt.s32.totalorder %s15, 3
      %p157 = pnand %p155, %p156
      %p158 = pneg %p157
      // Predicated region
      $region29: #{tpu_custom_call.1} parent=5 // pred_check
        _
      $region30: #{tpu_custom_call.1} parent=5 // pred_check_branch
        %160 = sbr.rel (%p157) target = $region32
      $region31: #{tpu_custom_call.1} parent=5 // pred_region
        %s161 = ssub.s32 %s15, 1
        %s162 = sand.u32 %s28, 1
        %s163 = scalar_lea.sflag [#allocation3], %s162
        %s164 = sand.u32 %s28, 1
        %s165 = smul.addr %s164, 48
        %s166 = scalar_lea.vmem [#allocation2], %s165
        // Predicated region
        $region33: #{tpu_custom_call.1} parent=31 // pred_check
          %p167 = pneg %p41
        $region34: #{tpu_custom_call.1} parent=31 // pred_check_branch
          %169 = sbr.rel (%p167) target = $region36
        $region35: #{tpu_custom_call.1} parent=31 // pred_region
          %170 = dma.done %s163, 768
        $region36: #{tpu_custom_call.1} parent=31 // pred_fallthru
          _
        %s171 = sand.u32 %s28, 1
        %s172 = scalar_lea.sflag [#allocation3], %s171
        %s173 = sand.u32 %s28, 1
        %s174 = smul.addr %s173, 48
        %s175 = scalar_lea.vmem [#allocation2], %s174
        %p176 = pneg %p41
        %p177 = pneg %p38
        %p178 = pneg %p62
        %p179 = pneg %p59
        %p180 = pneg %p83
        %p181 = pneg %p80
        %p182 = pneg %p109
        %p183 = pneg %p106
        %s184 = sand.u32 %s96, 1
        %s185 = scalar_lea.sflag [#allocation4], %s184
        %s186 = sand.u32 %s96, 1
        %s187 = smul.addr %s186, 24
        %s188 = scalar_lea.vmem [#allocation5], %s187
        %v189 = vld [vmem:[%s166] sm:$0xff]
        %v190 = vld [vmem:[%s166 + $0x8] sm:$0xff]
        %v191 = vld [vmem:[%s166 + $0x10] sm:$0xff]
        %v192 = vld [vmem:[%s166 + $0x18] sm:$0xff]
        %v193 = vld [vmem:[%s166 + $0x20] sm:$0xff]
        %v194 = vld [vmem:[%s166 + $0x28] sm:$0xff]
        %201 = vrot.lane.b32.xlu0 %v189, 2
        %v202 = vpop.permute.xlu0 %201
        %203 = vrot.lane.b32.xlu0 %v190, 2
        %v204 = vpop.permute.xlu0 %203
        %205 = vrot.lane.b32.xlu0 %v191, 2
        %v206 = vpop.permute.xlu0 %205
        %207 = vrot.lane.b32.xlu0 %v192, 2
        %v208 = vpop.permute.xlu0 %207
        %209 = vrot.lane.b32.xlu0 %v193, 2
        %v210 = vpop.permute.xlu0 %209
        %211 = vrot.lane.b32.xlu0 %v194, 2
        %v212 = vpop.permute.xlu0 %211
        %vm213 = vcmask 15360
        %v214 = vsel %vm213, %v202, %v204
        %v215 = vsel %vm213, %v206, %v208
        %v216 = vsel %vm213, %v210, %v212
        %217 = vrot.lane.b32.xlu0 %v189, 4
        %v218 = vpop.permute.xlu0 %217
        %219 = vrot.lane.b32.xlu0 %v190, 4
        %v220 = vpop.permute.xlu0 %219
        %221 = vrot.lane.b32.xlu0 %v191, 4
        %v222 = vpop.permute.xlu0 %221
        %223 = vrot.lane.b32.xlu0 %v192, 4
        %v224 = vpop.permute.xlu0 %223
        %225 = vrot.lane.b32.xlu0 %v193, 4
        %v226 = vpop.permute.xlu0 %225
        %227 = vrot.lane.b32.xlu0 %v194, 4
        %v228 = vpop.permute.xlu0 %227
        %vm229 = vcmask 31744
        %v230 = vsel %vm229, %v218, %v220
        %v231 = vsel %vm229, %v222, %v224
        %v232 = vsel %vm229, %v226, %v228
        %233 = vrot.lane.b32.xlu0 %v189, 6
        %v234 = vpop.permute.xlu0 %233
        %235 = vrot.lane.b32.xlu0 %v190, 6
        %v236 = vpop.permute.xlu0 %235
        %237 = vrot.lane.b32.xlu0 %v191, 6
        %v238 = vpop.permute.xlu0 %237
        %239 = vrot.lane.b32.xlu0 %v192, 6
        %v240 = vpop.permute.xlu0 %239
        %241 = vrot.lane.b32.xlu0 %v193, 6
        %v242 = vpop.permute.xlu0 %241
        %243 = vrot.lane.b32.xlu0 %v194, 6
        %v244 = vpop.permute.xlu0 %243
        %vm245 = vcmask 48128
        %v246 = vsel %vm245, %v234, %v236
        %v247 = vsel %vm245, %v238, %v240
        %v248 = vsel %vm245, %v242, %v244
        %249 = vrot.lane.b32.xlu0 %v189, 8
        %v250 = vpop.permute.xlu0 %249
        %251 = vrot.lane.b32.xlu0 %v191, 8
        %v252 = vpop.permute.xlu0 %251
        %253 = vrot.lane.b32.xlu0 %v193, 8
        %v254 = vpop.permute.xlu0 %253
        %v255 = vld [vmem:[%s1] sm:$0xff]
        %v256 = vld [vmem:[%s1 + $0x8] sm:$0xff]
        %v257 = vld [vmem:[%s1 + $0x10] sm:$0xff]
        %v258 = vld [vmem:[%s2] sm:$0xff]
        %v259 = vld [vmem:[%s2 + $0x8] sm:$0xff]
        %v260 = vld [vmem:[%s2 + $0x10] sm:$0xff]
        %262 = vset.pattern.permute.xlu0 0
        %263 = vperm.xlu0 %262, %v258
        %v264 = vpop.permute.xlu0 %263
        %267 = vset.pattern.permute.xlu0 0
        %268 = vperm.xlu0 %267, %v259
        %v269 = vpop.permute.xlu0 %268
        %272 = vset.pattern.permute.xlu0 0
        %273 = vperm.xlu0 %272, %v260
        %v274 = vpop.permute.xlu0 %273
        %276 = vrot.lane.b32.xlu0 %v189, 120
        %v277 = vpop.permute.xlu0 %276
        %278 = vrot.lane.b32.xlu0 %v190, 120
        %v279 = vpop.permute.xlu0 %278
        %280 = vrot.lane.b32.xlu0 %v191, 120
        %v281 = vpop.permute.xlu0 %280
        %282 = vrot.lane.b32.xlu0 %v192, 120
        %v283 = vpop.permute.xlu0 %282
        %284 = vrot.lane.b32.xlu0 %v193, 120
        %v285 = vpop.permute.xlu0 %284
        %286 = vrot.lane.b32.xlu0 %v194, 120
        %v287 = vpop.permute.xlu0 %286
        %288 = vrot.lane.b32.xlu0 %v202, 120
        %v289 = vpop.permute.xlu0 %288
        %290 = vrot.lane.b32.xlu0 %v214, 120
        %v291 = vpop.permute.xlu0 %290
        %292 = vrot.lane.b32.xlu0 %v206, 120
        %v293 = vpop.permute.xlu0 %292
        %294 = vrot.lane.b32.xlu0 %v215, 120
        %v295 = vpop.permute.xlu0 %294
        %296 = vrot.lane.b32.xlu0 %v210, 120
        %v297 = vpop.permute.xlu0 %296
        %298 = vrot.lane.b32.xlu0 %v216, 120
        %v299 = vpop.permute.xlu0 %298
        %300 = vrot.lane.b32.xlu0 %v218, 120
        %v301 = vpop.permute.xlu0 %300
        %302 = vrot.lane.b32.xlu0 %v230, 120
        %v303 = vpop.permute.xlu0 %302
        %304 = vrot.lane.b32.xlu0 %v222, 120
        %v305 = vpop.permute.xlu0 %304
        %306 = vrot.lane.b32.xlu0 %v231, 120
        %v307 = vpop.permute.xlu0 %306
        %308 = vrot.lane.b32.xlu0 %v226, 120
        %v309 = vpop.permute.xlu0 %308
        %310 = vrot.lane.b32.xlu0 %v232, 120
        %v311 = vpop.permute.xlu0 %310
        %312 = vrot.lane.b32.xlu0 %v234, 120
        %v313 = vpop.permute.xlu0 %312
        %314 = vrot.lane.b32.xlu0 %v246, 120
        %v315 = vpop.permute.xlu0 %314
        %316 = vrot.lane.b32.xlu0 %v238, 120
        %v317 = vpop.permute.xlu0 %316
        %318 = vrot.lane.b32.xlu0 %v247, 120
        %v319 = vpop.permute.xlu0 %318
        %320 = vrot.lane.b32.xlu0 %v242, 120
        %v321 = vpop.permute.xlu0 %320
        %322 = vrot.lane.b32.xlu0 %v248, 120
        %v323 = vpop.permute.xlu0 %322
        %324 = vrot.lane.b32.xlu0 %v250, 120
        %v325 = vpop.permute.xlu0 %324
        %326 = vrot.lane.b32.xlu0 %v252, 120
        %v327 = vpop.permute.xlu0 %326
        %328 = vrot.lane.b32.xlu0 %v254, 120
        %v329 = vpop.permute.xlu0 %328
        %vm330 = vcmask 982016
        %v331 = vsel %vm330, %v277, %v279
        %v332 = vsel %vm330, %v281, %v283
        %v333 = vsel %vm330, %v285, %v287
        %v334 = vsel %vm330, %v289, %v291
        %v335 = vsel %vm330, %v293, %v295
        %v336 = vsel %vm330, %v297, %v299
        %v337 = vsel %vm330, %v301, %v303
        %v338 = vsel %vm330, %v305, %v307
        %v339 = vsel %vm330, %v309, %v311
        %v340 = vsel %vm330, %v313, %v315
        %v341 = vsel %vm330, %v317, %v319
        %v342 = vsel %vm330, %v321, %v323
        %v359 = vsel %vm330, %v255, 0
        %v362 = vsel %vm330, %v256, 0
        %v365 = vsel %vm330, %v257, 0
        %367 = vmatprep.subr.mxu0 0.0
        %368 = vmatpush1.msra.mxu0 %v331
        %369 = vmatprep.subr.mxu0 0.0
        %370 = vmatpush1.msra.mxu0 %v332
        %371 = vmatprep.subr.mxu0 0.0
        %372 = vmatpush1.msra.mxu0 %v333
        %373 = vmatprep.subr.mxu0 0.0
        %374 = vmatpush1.msra.mxu0 %v334
        %375 = vmatprep.subr.mxu0 0.0
        %376 = vmatpush1.msra.mxu0 %v335
        %377 = vmatprep.subr.mxu0 0.0
        %378 = vmatpush1.msra.mxu0 %v336
        %379 = vmatprep.subr.mxu0 0.0
        %380 = vmatpush1.msra.mxu0 %v337
        %381 = vmatprep.subr.mxu0 0.0
        %382 = vmatpush1.msra.mxu0 %v338
        %383 = vmatprep.subr.mxu0 0.0
        %384 = vmatpush1.msra.mxu0 %v339
        %385 = vmatprep.subr.mxu0 0.0
        %386 = vmatpush1.msra.mxu0 %v340
        %387 = vmatprep.subr.mxu0 0.0
        %388 = vmatpush1.msra.mxu0 %v341
        %389 = vmatprep.subr.mxu0 0.0
        %390 = vmatpush1.msra.mxu0 %v342
        %391 = vmatprep.subr.mxu0 0.0
        %392 = vmatpush1.msra.mxu0 %v325
        %393 = vmatprep.subr.mxu0 0.0
        %394 = vmatpush1.msra.mxu0 %v327
        %395 = vmatprep.subr.mxu0 0.0
        %396 = vmatpush1.msra.mxu0 %v329
        %397 = vmatprep.subr.mxu0 0.0
        %398 = vmatpush1.msra.mxu0 0.0
        %399 = vmatprep.subr.mxu0 0.0
        %400 = vmatpush1.msra.mxu0 0.0
        %401 = vmatprep.subr.mxu0 0.0
        %402 = vmatpush1.msra.mxu0 0.0
        %403 = vmatprep.subr.mxu0 0.0
        %404 = vmatpush1.msra.mxu0 0.0
        %405 = vmatprep.subr.mxu0 0.0
        %406 = vmatpush1.msra.mxu0 0.0
        %407 = vmatprep.subr.mxu0 0.0
        %408 = vmatpush1.msra.mxu0 0.0
        %409 = vmatprep.subr.mxu0 0.0
        %410 = vmatpush1.msra.mxu0 0.0
        %411 = vmatprep.subr.mxu0 0.0
        %412 = vmatpush1.msra.mxu0 0.0
        %413 = vmatprep.subr.mxu0 0.0
        %414 = vmatpush1.msra.mxu0 0.0
        %415 = vmatprep.subr.mxu0 0.0
        %416 = vmatpush1.msra.mxu0 0.0
        %417 = vmatprep.subr.mxu0 0.0
        %418 = vmatpush1.msra.mxu0 0.0
        %419 = vmatprep.subr.mxu0 0.0
        %420 = vmatpush1.msra.mxu0 0.0
        %421 = vmatprep.subr.mxu0 0.0
        %422 = vmatpush1.msra.mxu0 0.0
        %423 = vmatprep.subr.mxu0 0.0
        %424 = vmatpush1.msra.mxu0 0.0
        %425 = vmatprep.subr.mxu0 0.0
        %426 = vmatpush1.msra.mxu0 0.0
        %427 = vmatprep.subr.mxu0 0.0
        %428 = vmatpush1.msra.mxu0 0.0
        %429 = vmatprep.subr.mxu0 0.0
        %430 = vmatpush1.msra.mxu0 0.0
        %431 = vmatprep.mubr.f32.mxu0 0.0
        %432 = vmatmul.mubr.f32.gmra.mrb[0].mxu0 %v359
        %v433 = vpop.f32.mrb[0].mxu0
        %v434 = vadd.f32 %v264, %v433
        %v435 = vpop.f32.mrb[0].mxu0
        %436 = vmatprep.mubr.f32.mxu0 0.0
        %437 = vmatmul.mubr.f32.gmra.mrb[0].mxu0 %v362
        %v438 = vpop.f32.mrb[0].mxu0
        %v439 = vadd.f32 %v269, %v438
        %v440 = vpop.f32.mrb[0].mxu0
        %441 = vmatprep.mubr.f32.mxu0 0.0
        %442 = vmatmul.mubr.f32.gmra.mrb[0].mxu0 %v365
        %v443 = vpop.f32.mrb[0].mxu0
        %v444 = vadd.f32 %v274, %v443
        %v445 = vpop.f32.mrb[0].mxu0
        %446 = vdwg.mxu0
        %v447 = vmax.f32 %v434, 0.0
        %v448 = vmax.f32 %v439, 0.0
        %v449 = vmax.f32 %v444, 0.0
        %450 = vst [vmem:[%s188] sm:$0xff] %v447
        %451 = vst [vmem:[%s188 + $0x8] sm:$0xff] %v448
        %452 = vst [vmem:[%s188 + $0x10] sm:$0xff] %v449
        %s453 = sand.u32 %s96, 1
        %s454 = scalar_lea.sflag [#allocation4], %s453
        %s455 = sand.u32 %s96, 1
        %s456 = smul.addr %s455, 24
        %s457 = scalar_lea.vmem [#allocation5], %s456
        // Predicated region
        $region37: #{tpu_custom_call.1} parent=31 // pred_check
          %p458 = pneg %p106
        $region38: #{tpu_custom_call.1} parent=31 // pred_check_branch
          %460 = sbr.rel (%p458) target = $region40
        $region39: #{tpu_custom_call.1} parent=31 // pred_region
          %s462 = ssub.s32 384, 384
          %463 = vsyncadd %s454, %s462
          %s464 = smul.addr %s20, 3
          %s465 = smul.addr %s464, 128
          %s466 = scalar_lea.hbm %s3, %s465
          %s467 = sshll.u32 %s457, 4
          %s468 = int_to_ptr.vmem [resolvable:$true] %s467
          %473 = dma.vmem_to_hbm [thread:$0]  %s468, 384, %s466, %s454, 128, 128, 8
        $region40: #{tpu_custom_call.1} parent=31 // pred_fallthru
          _
      $region32: #{tpu_custom_call.1} parent=5 // pred_fallthru
        _
      %p474 = scmp.le.s32.totalorder 2, %s15
      // Predicated region
      $region41: #{tpu_custom_call.1} parent=5 // pred_check
        %p475 = pneg %p474
      $region42: #{tpu_custom_call.1} parent=5 // pred_check_branch
        %477 = sbr.rel (%p475) target = $region44
      $region43: #{tpu_custom_call.1} parent=5 // pred_region
        %s478 = ssub.s32 %s15, 2
        // Predicated region
        $region45: #{tpu_custom_call.1} parent=43 // pred_check
          %p479 = pneg %p112
        $region46: #{tpu_custom_call.1} parent=43 // pred_check_branch
          %481 = sbr.rel (%p479) target = $region48
        $region47: #{tpu_custom_call.1} parent=43 // pred_region
          %s482 = sand.u32 %s97, 1
          %s483 = scalar_lea.sflag [#allocation4], %s482
          %s484 = sand.u32 %s97, 1
          %s485 = smul.addr %s484, 24
          %s486 = scalar_lea.vmem [#allocation5], %s485
          %487 = dma.done %s483, 384
        $region48: #{tpu_custom_call.1} parent=43 // pred_fallthru
          _
      $region44: #{tpu_custom_call.1} parent=5 // pred_fallthru
        _
    $region6: #{tpu_custom_call.1} parent=1 // loop_footer
      %s19 = sadd.s32 1, %s15
    $region7: #{tpu_custom_call.1} parent=1 // loop_footer_branch
      %14 = sbr.rel target = $region3
    $region8: #{tpu_custom_call.1} parent=1 // loop_exit
      _
    %488 = vsyncpa [#allocation3], 1
    %s489 = scalar_lea.sflag [#allocation3], 1
    %490 = vsyncpa %s489, 1
    %491 = vsyncpa [#allocation4], 1
    %s492 = scalar_lea.sflag [#allocation4], 1
    %493 = vsyncpa %s492, 1

</llo_original>
